<compile_context>
chip_gen: v6e
topology: v6e:2x2x1
jax: 0.10.0
libtpu: 0.0.40
codegen_flags: <defaults>
</compile_context>

<pallas_src>
import jax
import jax.numpy as jnp
from jax.experimental import pallas as pl
from jax.experimental.pallas import tpu as pltpu

LANES = 128


def _swish_kernel(x_ref, o_ref):
    xf = x_ref[...].astype(jnp.float32)
    o_ref[...] = (xf * jax.nn.sigmoid(xf)).astype(o_ref.dtype)


def _round_up(x, m):
    return ((x + m - 1) // m) * m


def _sublane_pack(dtype):
    # native packed sublane tile: 8 rows for 4-byte, 16 for 2-byte, 32 for 1-byte
    itemsize = jnp.dtype(dtype).itemsize
    return max(8, 32 // itemsize)


def _tpu_params():
    """Best-effort (num_tensorcores, vmem_bytes); safe fallbacks if unavailable."""
    cores, vmem = 1, 128 << 20
    try:
        info = pltpu.get_tpu_info()
        for attr in ("num_tensorcores", "tensorcore_count", "num_cores", "cores_per_chip"):
            v = getattr(info, attr, None)
            if isinstance(v, int) and v > 0:
                cores = v
                break
        v = getattr(info, "vmem_capacity_bytes", None)
        if isinstance(v, int) and v > 0:
            vmem = v
    except Exception:
        pass
    return cores, vmem


def _choose_block_rows(rows, sub, cores, target_bytes, row_bytes):
    """Pick the row-block size: big blocks on 1-TC chips, balanced >=2*cores blocks otherwise."""
    if rows <= sub:
        return rows  # single full block (block dim == full array dim is allowed)
    tr = max(sub, (max(1, target_bytes // max(1, row_bytes)) // sub) * sub)
    if cores >= 2:
        # Ensure at least 2*cores near-equal blocks so every TensorCore streams
        # and the masked partial block doesn't idle one core for half a step.
        balanced = _round_up(pl.cdiv(rows, 2 * cores), sub)
        tr = min(tr, balanced)
    tr = min(tr, (rows // sub) * sub)
    return max(sub, tr)


def _run_2d(x2d, tr, *, donate, itemsize, n, dtype, sub):
    rows, lane = x2d.shape
    grid = (pl.cdiv(rows, tr),)  # partial last block masked by Pallas
    # VMEM footprint: 2 buffers x (in + out) x one (lane/sublane padded) block.
    block_vmem = _round_up(tr, sub) * _round_up(lane, LANES) * itemsize
    vmem_limit = min(100 << 20, max(24 << 20, 4 * block_vmem + (4 << 20)))
    return pl.pallas_call(
        _swish_kernel,
        out_shape=jax.ShapeDtypeStruct((rows, lane), dtype),
        grid_spec=pltpu.PrefetchScalarGridSpec(
            num_scalar_prefetch=0,
            grid=grid,
            in_specs=[pl.BlockSpec((tr, lane), lambda i: (i, 0))],
            out_specs=pl.BlockSpec((tr, lane), lambda i: (i, 0)),
        ),
        compiler_params=pltpu.CompilerParams(
            # "parallel" lets the runtime shard the (balanced) grid across TCs
            # on multi-core chips; on 1-TC chips it is equivalent to arbitrary.
            dimension_semantics=("parallel",),
            vmem_limit_bytes=vmem_limit,
        ),
        cost_estimate=pl.CostEstimate(
            flops=4 * n,            # mul + add + recip-ish per element (advisory)
            transcendentals=n,      # one exp per element
            bytes_accessed=2 * n * itemsize,
        ),
        input_output_aliases=({0: 0} if donate else {}),
    )(x2d)


def swish(x, *, donate_input=False):
    """Elementwise x * sigmoid(x); preserves shape & dtype (torch Swish semantics)."""
    orig_shape = x.shape
    dtype = x.dtype
    n = x.size
    if n == 0:
        return x

    itemsize = jnp.dtype(dtype).itemsize
    sub = _sublane_pack(dtype)
    cores, _ = _tpu_params()
    # ~8 MiB blocks on multi-TC (v7x) chips, ~4 MiB elsewhere (v5e/v6e plateau).
    target_bytes = (8 << 20) if cores >= 2 else (4 << 20)

    # Fast path: lane-dense (rows, 128), zero-copy reshape both ways.
    if n % LANES == 0:
        rows = n // LANES
        x2d = x.reshape(rows, LANES)
        tr = _choose_block_rows(rows, sub, cores, target_bytes, LANES * itemsize)
        out2d = _run_2d(x2d, tr, donate=donate_input, itemsize=itemsize,
                        n=n, dtype=dtype, sub=sub)
        return out2d.reshape(orig_shape)

    # Ragged path: collapse to (leading, last_dim) -- still a free contiguous
    # reshape, no pad / slice HBM passes. Last block dim == full array dim, so
    # the (8,128) BlockSpec constraint is satisfied; lanes > last_dim are masked.
    d_last = orig_shape[-1] if x.ndim >= 2 else n
    d_pad = _round_up(d_last, LANES)
    if x.ndim >= 2 and d_pad * sub * itemsize <= (16 << 20):
        rows = n // d_last
        x2d = x.reshape(rows, d_last)
        tr = _choose_block_rows(rows, sub, cores, target_bytes, d_pad * itemsize)
        out2d = _run_2d(x2d, tr, donate=donate_input, itemsize=itemsize,
                        n=n, dtype=dtype, sub=sub)
        return out2d.reshape(orig_shape)

    # Pathological fallback (0-/1-D ragged, or huge unaligned last dim):
    # pad to whole lanes (swish(0) == 0, so padding is inert), then slice back.
    rows = _round_up(pl.cdiv(n, LANES), sub)
    flat = jnp.pad(jnp.ravel(x), (0, rows * LANES - n))
    x2d = flat.reshape(rows, LANES)
    tr = _choose_block_rows(rows, sub, cores, target_bytes, LANES * itemsize)
    out2d = _run_2d(x2d, tr, donate=False, itemsize=itemsize,
                    n=n, dtype=dtype, sub=sub)
    return out2d.reshape(-1)[:n].reshape(orig_shape)


if __name__ == "__main__":
    key = jax.random.PRNGKey(0)
    # NCHW input, as a PyTorch conv-style tensor would be
    x = jax.random.normal(key, (2, 4, 16, 16), dtype=jnp.float32)

    y = swish(x)
    jax.block_until_ready(y)

    y_ref = x * jax.nn.sigmoid(x)
    assert y.shape == x.shape and y.dtype == x.dtype
    assert jnp.allclose(y, y_ref, atol=1e-6, rtol=1e-6)

    # Ragged path (n % 128 != 0): exercised zero-copy (rows, last_dim) blocking.
    x2 = jax.random.normal(jax.random.PRNGKey(1), (3, 5, 7, 11), dtype=jnp.float32)
    y2 = swish(x2)
    jax.block_until_ready(y2)
    assert jnp.allclose(y2, x2 * jax.nn.sigmoid(x2), atol=1e-6, rtol=1e-6)

    # Widened aligned fast path: bf16, multiple of 128 but not of 16*128.
    x3 = jax.random.normal(jax.random.PRNGKey(2), (2, 3, 4, 16), dtype=jnp.bfloat16)
    y3 = swish(x3)
    jax.block_until_ready(y3)
    x3f = x3.astype(jnp.float32)
    ref3 = (x3f * jax.nn.sigmoid(x3f)).astype(jnp.bfloat16)
    assert y3.shape == x3.shape and y3.dtype == jnp.bfloat16
    assert jnp.allclose(y3.astype(jnp.float32), ref3.astype(jnp.float32),
                        atol=2e-2, rtol=2e-2)

    print("KERNEL_OK")
</pallas_src>

<mosaic_0001>
module attributes {stable_mosaic.version = 11 : i64} {
  func.func @_swish_kernel(%arg0: i32, %arg1: memref<16x128xf32, #tpu.memory_space<vmem>>, %arg2: memref<16x128xf32, #tpu.memory_space<vmem>>) attributes {dimension_semantics = [#tpu.dimension_semantics<parallel>], iteration_bounds = array<i64: 1>, scalar_prefetch = 0 : i64, scratch_operands = 0 : i64, tpu.core_type = #tpu.core_type<tc>, window_params = [{transform_indices = @transform_0, window_bounds = array<i64: 16, 128>}, {transform_indices = @transform_1, window_bounds = array<i64: 16, 128>}]} {
    %c0 = arith.constant 0 : index
    %c0_0 = arith.constant 0 : index
    %0 = vector.load %arg1[%c0, %c0_0] : memref<16x128xf32, #tpu.memory_space<vmem>>, vector<16x128xf32>
    %1 = arith.negf %0 : vector<16x128xf32>
    %2 = math.exp %1 : vector<16x128xf32>
    %cst = arith.constant 1.000000e+00 : f32
    %3 = vector.broadcast %cst : f32 to vector<16x128xf32>
    %4 = arith.addf %3, %2 : vector<16x128xf32>
    %5 = arith.divf %3, %4 : vector<16x128xf32>
    %6 = arith.mulf %0, %5 : vector<16x128xf32>
    %c0_1 = arith.constant 0 : index
    %c0_2 = arith.constant 0 : index
    %7 = vector.load %arg2[%c0_1, %c0_2] : memref<16x128xf32, #tpu.memory_space<vmem>>, vector<16x128xf32>
    tpu.vector_store %arg2[%c0_1, %c0_2], %6 {strides = array<i32>} : memref<16x128xf32, #tpu.memory_space<vmem>>, vector<16x128xf32>,
    return
  }
  func.func @transform_0(%arg0: i32) -> (i32, i32) {
    %c0_i32 = arith.constant 0 : i32
    %c0_i32_0 = arith.constant 0 : i32
    return %arg0, %c0_i32 : i32, i32
  }
  func.func @transform_1(%arg0: i32) -> (i32, i32) {
    %c0_i32 = arith.constant 0 : i32
    %c0_i32_0 = arith.constant 0 : i32
    return %arg0, %c0_i32 : i32, i32
  }
}

</mosaic_0001>

<llo_original>
// kernel: tpu_custom_call.1
$region0: #{tpu_custom_call.1}
  #allocation0 [shape = 'u32[]', space=smem, size = 0x4, offset = 0x4, fixed_abs, tag = 'smem constant byte address 0x4 - core index']
  #allocation1 [shape = 'u32[144,128]{1,0:T(1,128)}', space=vmem, size = 0x12000, scoped, tag = 'internal scratch']
  %s0 = inlined_call_operand.hbm [shape: f32[16,128], index: 0, kind: input, shape index: {}]
  %s1 = inlined_call_operand.hbm [shape: f32[16,128], index: 1, kind: output, shape index: {}]
  %s2 = sld [smem:[#allocation0]]
  $region18: #{tpu_custom_call.1} parent=0
    _
  %s4 = ssub.s32 1, %s2
  %s5 = scalar_select 0, %s4, %s2
  $region1: #{tpu_custom_call.1} parent=0
    #allocation2 [shape = 'u8[8192]{0}', space=vmem, size = 0x2000, scoped, tag = 'input window, operand 0, single buffered']
    #allocation3 [shape = 's32[1]{0}', space=sflag, size = 0x4, scoped, tag = 'scoped memory for tpu_custom_call.1']
    #allocation4 [shape = 's32[1]{0}', space=sflag, size = 0x4, scoped, tag = 'scoped memory for tpu_custom_call.1']
    #allocation5 [shape = 'u8[8192]{0}', space=vmem, size = 0x2000, scoped, tag = 'output window, operand 0, single buffered']
    %6 = vsyncpa [#allocation3], 0
    %7 = vsyncpa [#allocation4], 0
    // Predicated region
    $region2: #{tpu_custom_call.1} parent=1 // pred_check
      _
    $region3: #{tpu_custom_call.1} parent=1 // pred_check_branch
      %9 = sbr.rel (0) target = $region5
    $region4: #{tpu_custom_call.1} parent=1 // pred_region
      %s11 = ssub.s32 256, 256
      %12 = vsyncadd [#allocation3], %s11
      %s13 = sshll.u32 [#allocation2], 4
      %s14 = int_to_ptr.vmem [resolvable:$true] %s13
      %19 = dma.hbm_to_vmem [thread:$0]  %s0, 256, %s14, [#allocation3], 128, 128, 8
    $region5: #{tpu_custom_call.1} parent=1 // pred_fallthru
      _
    // Predicated region
    $region6: #{tpu_custom_call.1} parent=1 // pred_check
      _
    $region7: #{tpu_custom_call.1} parent=1 // pred_check_branch
      %21 = sbr.rel (0) target = $region9
    $region8: #{tpu_custom_call.1} parent=1 // pred_region
      %22 = dma.done [#allocation3], 256
    $region9: #{tpu_custom_call.1} parent=1 // pred_fallthru
      _
    %v23 = vld [vmem:[#allocation2] sm:$0xff]
    %v24 = vld [vmem:[#allocation2 + $0x8] sm:$0xff]
    %v25 = vxor.u32 %v23, 2147483648
    %v26 = vxor.u32 %v24, 2147483648
    %v27 = vmul.f32 %v25, 1.442695
    %v28 = vpow.pop %v27
    %v29 = vmul.f32 %v26, 1.442695
    %v30 = vpow.pop %v29
    %v31 = vadd.f32 %v28, 1.0
    %v32 = vadd.f32 %v30, 1.0
    %v33 = vrcp.pop %v31
    %v34 = vmul.f32 1.0, %v33
    %v35 = vrcp.pop %v32
    %v36 = vmul.f32 1.0, %v35
    %v37 = vmul.f32 %v23, %v34
    %v38 = vmul.f32 %v24, %v36
    %39 = vst [vmem:[#allocation5] sm:$0xff] %v37
    %40 = vst [vmem:[#allocation5 + $0x8] sm:$0xff] %v38
    // Predicated region
    $region10: #{tpu_custom_call.1} parent=1 // pred_check
      _
    $region11: #{tpu_custom_call.1} parent=1 // pred_check_branch
      %42 = sbr.rel (0) target = $region13
    $region12: #{tpu_custom_call.1} parent=1 // pred_region
      %s44 = ssub.s32 256, 256
      %45 = vsyncadd [#allocation4], %s44
      %s46 = sshll.u32 [#allocation5], 4
      %s47 = int_to_ptr.vmem [resolvable:$true] %s46
      %52 = dma.vmem_to_hbm [thread:$0]  %s47, 256, %s1, [#allocation4], 128, 128, 8
    $region13: #{tpu_custom_call.1} parent=1 // pred_fallthru
      _
    // Predicated region
    $region14: #{tpu_custom_call.1} parent=1 // pred_check
      _
    $region15: #{tpu_custom_call.1} parent=1 // pred_check_branch
      %54 = sbr.rel (0) target = $region17
    $region16: #{tpu_custom_call.1} parent=1 // pred_region
      %55 = dma.done [#allocation4], 256
    $region17: #{tpu_custom_call.1} parent=1 // pred_fallthru
      _
    %56 = vsyncpa [#allocation3], 1
    %57 = vsyncpa [#allocation4], 1

</llo_original>
